<compile_context>
chip_gen: v6e
topology: v6e:2x2x1
jax: 0.10.0
libtpu: 0.0.40
codegen_flags: <defaults>
</compile_context>

<pallas_src>
import jax
import jax.numpy as jnp
from jax.experimental import pallas as pl
from jax.experimental.pallas import tpu as pltpu

LN_EPS = 1e-5


def _round_up(x, m):
    return ((x + m - 1) // m) * m


def _cdiv(a, b):
    return (a + b - 1) // b


def ffn_kernel(x_ref, w1_ref, b1_ref, w2_ref, b2_ref, g_ref, beta_ref,
               o_ref, acc_ref):
    k = pl.program_id(1)

    @pl.when(k == 0)
    def _init():
        acc_ref[...] = jnp.zeros_like(acc_ref)

    # Linear 1 slice: bf16 operands, f32 accumulation on the MXU.
    x_mm = x_ref[...].astype(w1_ref.dtype)
    h_acc = jnp.dot(x_mm, w1_ref[...], preferred_element_type=jnp.float32)
    # Bias-add + ReLU epilogue in bf16 (h feeds the MXU in bf16 anyway; bf16 VALU
    # halves per-element VPU pressure on v6e/v7x; negligible numeric change).
    h = jnp.maximum(h_acc.astype(w2_ref.dtype) + b1_ref[...], 0)
    # Linear 2 partial product accumulated into the resident f32 scratch.
    acc_ref[...] += jnp.dot(h, w2_ref[...], preferred_element_type=jnp.float32)

    @pl.when(k == pl.num_programs(1) - 1)
    def _finalize():
        # Residual + LayerNorm over d_model, all in f32 with the original x.
        x = x_ref[...].astype(jnp.float32)
        z = x + acc_ref[...] + b2_ref[...]
        mean = jnp.mean(z, axis=-1, keepdims=True)
        cen = z - mean
        var = jnp.mean(cen * cen, axis=-1, keepdims=True)
        zn = cen * jax.lax.rsqrt(var + LN_EPS)
        o_ref[...] = (zn * g_ref[...] + beta_ref[...]).astype(o_ref.dtype)


def feed_forward_net(x, w1, b1, w2, b2, gamma, beta, *,
                     tm=512, tn=512, param_dtype=jnp.bfloat16):
    """x: (B, S, d_model).  Weights pre-transposed: w1 (d_model, d_ffn), w2 (d_ffn, d_model).
    Returns (B, S, d_model) in x.dtype."""
    B, S, d_model = x.shape
    d_ffn = w1.shape[1]
    n_rows = B * S

    # ---- Row tiling: balanced tiles, >= 2 tiles when possible (v7x megacore). ----
    if n_rows <= 8:
        tm_eff = n_rows                      # block == full dim (legal, tiny input)
        grid_i = 1
    else:
        n_tiles = max(2, _cdiv(n_rows, tm))  # keep both TCs busy on small inputs
        tm_eff = _round_up(_cdiv(n_rows, n_tiles), 8)
        grid_i = _cdiv(n_rows, tm_eff)

    # ---- d_ffn tiling: stream W1 columns / W2 rows in chunks of tn. ----
    tn_eff = min(tn, d_ffn)
    d_ffn_p = _round_up(d_ffn, tn_eff)
    grid_k = d_ffn_p // tn_eff

    x2d = x.reshape(n_rows, d_model)         # no padding: Pallas masks edge blocks

    # Cast to compute dtype (no-op if weights are already stored in bf16 at rest).
    w1c = w1.astype(param_dtype)
    w2c = w2.astype(param_dtype)
    b1c = b1.astype(param_dtype)
    if d_ffn_p != d_ffn:
        # Zero-pad the hidden dim so every k tile is exact; relu(0 + 0) @ 0 == 0.
        pad = d_ffn_p - d_ffn
        w1c = jnp.pad(w1c, ((0, 0), (0, pad)))
        b1c = jnp.pad(b1c, ((0, pad),))
        w2c = jnp.pad(w2c, ((0, pad), (0, 0)))
    b1_2d = b1c.reshape(1, d_ffn_p)
    b2_2d = b2.reshape(1, d_model).astype(jnp.float32)
    g_2d = gamma.reshape(1, d_model).astype(jnp.float32)
    beta_2d = beta.reshape(1, d_model).astype(jnp.float32)

    # ---- VMEM budget: count weights once, cap at ~80% of this chip's VMEM. ----
    try:
        vmem_cap = int(pltpu.get_tpu_info().vmem_capacity_bytes)
    except Exception:  # pragma: no cover - conservative fallback
        vmem_cap = 64 << 20
    vmem_budget = int(vmem_cap * 0.8)        # headroom for compiler scratch / sems

    w_bufs = 1 if grid_k == 1 else 2         # Buffered(1) when weights are resident
    pbytes = jnp.dtype(param_dtype).itemsize
    vmem_est = (
        2 * tm_eff * d_model * 4             # x tiles (double-buffered)
        + 2 * tm_eff * d_model * 4           # out tiles
        + w_bufs * d_model * tn_eff * pbytes # W1 tile(s)
        + w_bufs * tn_eff * d_model * pbytes # W2 tile(s)
        + w_bufs * tn_eff * pbytes           # b1 tile(s)
        + 3 * d_model * 4                    # b2 / gamma / beta (single-buffered)
        + tm_eff * d_model * 4               # f32 accumulator scratch
        + tm_eff * tn_eff * (4 + pbytes)     # h: f32 MXU accum + bf16 epilogue
    )
    vmem_limit = int(min(max(int(1.4 * vmem_est), 32 << 20), vmem_budget))

    const_pipe = dict(pipeline_mode=pl.Buffered(1))   # grid-invariant blocks
    w_pipe = const_pipe if grid_k == 1 else {}        # stream weights when tiled

    out2d = pl.pallas_call(
        ffn_kernel,
        out_shape=jax.ShapeDtypeStruct((n_rows, d_model), x.dtype),
        grid_spec=pltpu.PrefetchScalarGridSpec(
            num_scalar_prefetch=0,
            grid=(grid_i, grid_k),
            in_specs=[
                pl.BlockSpec((tm_eff, d_model), lambda i, k: (i, 0)),            # x rows
                pl.BlockSpec((d_model, tn_eff), lambda i, k: (0, k), **w_pipe),  # W1 cols
                pl.BlockSpec((1, tn_eff), lambda i, k: (0, k), **w_pipe),        # b1
                pl.BlockSpec((tn_eff, d_model), lambda i, k: (k, 0), **w_pipe),  # W2 rows
                pl.BlockSpec((1, d_model), lambda i, k: (0, 0), **const_pipe),   # b2
                pl.BlockSpec((1, d_model), lambda i, k: (0, 0), **const_pipe),   # gamma
                pl.BlockSpec((1, d_model), lambda i, k: (0, 0), **const_pipe),   # beta
            ],
            out_specs=pl.BlockSpec((tm_eff, d_model), lambda i, k: (i, 0)),
            scratch_shapes=[pltpu.VMEM((tm_eff, d_model), jnp.float32)],
        ),
        compiler_params=pltpu.CompilerParams(
            dimension_semantics=("parallel", "arbitrary"),
            vmem_limit_bytes=vmem_limit,
        ),
    )(x2d, w1c, b1_2d, w2c, b2_2d, g_2d, beta_2d)

    return out2d.reshape(B, S, d_model)


def reference_f32(x, w1, b1, w2, b2, gamma, beta):
    h = jnp.maximum(x @ w1 + b1, 0.0)
    y = h @ w2 + b2
    z = x + y
    mean = jnp.mean(z, axis=-1, keepdims=True)
    var = jnp.mean((z - mean) ** 2, axis=-1, keepdims=True)
    zn = (z - mean) / jnp.sqrt(var + LN_EPS)
    return zn * gamma + beta


def reference_matched(x, w1, b1, w2, b2, gamma, beta, param_dtype=jnp.bfloat16):
    # Same bf16-operand / f32-accumulation / bf16 bias+ReLU recipe as the kernel.
    B, S, d_model = x.shape
    x2d = x.reshape(-1, d_model)
    h_acc = jnp.dot(x2d.astype(param_dtype), w1.astype(param_dtype),
                    preferred_element_type=jnp.float32)
    h = jnp.maximum(h_acc.astype(param_dtype) + b1.astype(param_dtype), 0)
    y = jnp.dot(h, w2.astype(param_dtype), preferred_element_type=jnp.float32)
    z = x2d + y + b2
    mean = jnp.mean(z, axis=-1, keepdims=True)
    var = jnp.mean((z - mean) ** 2, axis=-1, keepdims=True)
    zn = (z - mean) / jnp.sqrt(var + LN_EPS)
    return (zn * gamma + beta).reshape(B, S, d_model)


if __name__ == "__main__":
    # Small but lane-dense shapes (d_model, d_ffn multiples of 128).
    B, S, d_model, d_ffn = 2, 8, 128, 256

    key = jax.random.PRNGKey(0)
    kx, kw1, kb1, kw2, kb2 = jax.random.split(key, 5)

    x = jax.random.normal(kx, (B, S, d_model), dtype=jnp.float32)

    # PyTorch Linear default init: U(-1/sqrt(fan_in), 1/sqrt(fan_in))
    lim1 = 1.0 / jnp.sqrt(d_model)
    lim2 = 1.0 / jnp.sqrt(d_ffn)
    w1 = jax.random.uniform(kw1, (d_model, d_ffn), jnp.float32, -lim1, lim1)
    b1 = jax.random.uniform(kb1, (d_ffn,), jnp.float32, -lim1, lim1)
    w2 = jax.random.uniform(kw2, (d_ffn, d_model), jnp.float32, -lim2, lim2)
    b2 = jax.random.uniform(kb2, (d_model,), jnp.float32, -lim2, lim2)
    gamma = jnp.ones((d_model,), jnp.float32)   # nn.LayerNorm defaults
    beta = jnp.zeros((d_model,), jnp.float32)

    # Store weights in bf16 at rest so no per-call f32->bf16 HBM round trip.
    w1_bf = w1.astype(jnp.bfloat16)
    w2_bf = w2.astype(jnp.bfloat16)
    b1_bf = b1.astype(jnp.bfloat16)

    ffn = jax.jit(feed_forward_net)
    out = ffn(x, w1_bf, b1_bf, w2_bf, b2, gamma, beta)
    out = jax.block_until_ready(out)

    assert out.shape == (B, S, d_model)
    # Tight check vs a bf16-matched reference, loose check vs pure-f32 math.
    ref_m = reference_matched(x, w1_bf, b1_bf, w2_bf, b2, gamma, beta)
    ref_f = reference_f32(x, w1, b1, w2, b2, gamma, beta)
    assert jnp.allclose(out, ref_m, atol=1e-2, rtol=1e-2), "mismatch vs matched ref"
    assert jnp.allclose(out, ref_f, atol=8e-2, rtol=8e-2), "mismatch vs f32 ref"

    print("KERNEL_OK")
</pallas_src>

<mosaic_0001>
module attributes {stable_mosaic.version = 11 : i64} {
  func.func @ffn_kernel(%arg0: i32, %arg1: i32, %arg2: memref<8x128xf32, #tpu.memory_space<vmem>>, %arg3: memref<128x256xbf16, #tpu.memory_space<vmem>>, %arg4: memref<1x256xbf16, #tpu.memory_space<vmem>>, %arg5: memref<256x128xbf16, #tpu.memory_space<vmem>>, %arg6: memref<1x128xf32, #tpu.memory_space<vmem>>, %arg7: memref<1x128xf32, #tpu.memory_space<vmem>>, %arg8: memref<1x128xf32, #tpu.memory_space<vmem>>, %arg9: memref<8x128xf32, #tpu.memory_space<vmem>>, %arg10: memref<8x128xf32, #tpu.memory_space<vmem>>) attributes {dimension_semantics = [#tpu.dimension_semantics<parallel>, #tpu.dimension_semantics<arbitrary>], iteration_bounds = array<i64: 2, 1>, scalar_prefetch = 0 : i64, scratch_operands = 1 : i64, tpu.core_type = #tpu.core_type<tc>, window_params = [{transform_indices = @transform_0, window_bounds = array<i64: 8, 128>}, {pipeline_mode = #tpu.pipeline_mode<synchronous>, transform_indices = @transform_1, window_bounds = array<i64: 128, 256>}, {pipeline_mode = #tpu.pipeline_mode<synchronous>, transform_indices = @transform_2, window_bounds = array<i64: 1, 256>}, {pipeline_mode = #tpu.pipeline_mode<synchronous>, transform_indices = @transform_3, window_bounds = array<i64: 256, 128>}, {pipeline_mode = #tpu.pipeline_mode<synchronous>, transform_indices = @transform_4, window_bounds = array<i64: 1, 128>}, {pipeline_mode = #tpu.pipeline_mode<synchronous>, transform_indices = @transform_5, window_bounds = array<i64: 1, 128>}, {pipeline_mode = #tpu.pipeline_mode<synchronous>, transform_indices = @transform_6, window_bounds = array<i64: 1, 128>}, {transform_indices = @transform_7, window_bounds = array<i64: 8, 128>}]} {
    %c0_i32 = arith.constant 0 : i32
    %0 = arith.cmpi eq, %arg1, %c0_i32 : i32
    %1 = arith.extui %0 : i1 to i32
    %c0_i32_0 = arith.constant 0 : i32
    %2 = arith.cmpi ne, %1, %c0_i32_0 : i32
    scf.if %2 {
      %cst_16 = arith.constant 0.000000e+00 : f32
      %21 = vector.broadcast %cst_16 : f32 to vector<8x128xf32>
      %c0_17 = arith.constant 0 : index
      %c0_18 = arith.constant 0 : index
      %22 = vector.load %arg10[%c0_17, %c0_18] : memref<8x128xf32, #tpu.memory_space<vmem>>, vector<8x128xf32>
      tpu.vector_store %arg10[%c0_17, %c0_18], %21 {strides = array<i32>} : memref<8x128xf32, #tpu.memory_space<vmem>>, vector<8x128xf32>,
    } else {
    }
    %c0 = arith.constant 0 : index
    %c0_1 = arith.constant 0 : index
    %3 = vector.load %arg2[%c0, %c0_1] : memref<8x128xf32, #tpu.memory_space<vmem>>, vector<8x128xf32>
    %4 = arith.truncf %3 : vector<8x128xf32> to vector<8x128xbf16>
    %c0_2 = arith.constant 0 : index
    %c0_3 = arith.constant 0 : index
    %5 = vector.load %arg3[%c0_2, %c0_3] : memref<128x256xbf16, #tpu.memory_space<vmem>>, vector<128x256xbf16>
    %cst = arith.constant dense<0.000000e+00> : vector<8x256xf32>
    %6 = tpu.matmul %4, %5, %cst {dimension_numbers = #tpu.dot_dimension_numbers<[1], [0], [0], [1], [0, 0, 1, 1], [], []>} : vector<8x128xbf16>, vector<128x256xbf16>, vector<8x256xf32> -> vector<8x256xf32>
    %7 = arith.truncf %6 : vector<8x256xf32> to vector<8x256xbf16>
    %c0_4 = arith.constant 0 : index
    %c0_5 = arith.constant 0 : index
    %8 = vector.load %arg4[%c0_4, %c0_5] : memref<1x256xbf16, #tpu.memory_space<vmem>>, vector<1x256xbf16>
    %9 = vector.broadcast %8 : vector<1x256xbf16> to vector<8x256xbf16>
    %10 = arith.addf %7, %9 : vector<8x256xbf16>
    %cst_6 = arith.constant 0.000000e+00 : bf16
    %11 = vector.broadcast %cst_6 : bf16 to vector<8x256xbf16>
    %12 = arith.maximumf %10, %11 : vector<8x256xbf16>
    %c0_7 = arith.constant 0 : index
    %c0_8 = arith.constant 0 : index
    %13 = vector.load %arg10[%c0_7, %c0_8] : memref<8x128xf32, #tpu.memory_space<vmem>>, vector<8x128xf32>
    %c0_9 = arith.constant 0 : index
    %c0_10 = arith.constant 0 : index
    %14 = vector.load %arg5[%c0_9, %c0_10] : memref<256x128xbf16, #tpu.memory_space<vmem>>, vector<256x128xbf16>
    %cst_11 = arith.constant dense<0.000000e+00> : vector<8x128xf32>
    %15 = tpu.matmul %12, %14, %cst_11 {dimension_numbers = #tpu.dot_dimension_numbers<[1], [0], [0], [1], [0, 0, 1, 1], [], []>} : vector<8x256xbf16>, vector<256x128xbf16>, vector<8x128xf32> -> vector<8x128xf32>
    %16 = arith.addf %13, %15 : vector<8x128xf32>
    %c0_12 = arith.constant 0 : index
    %c0_13 = arith.constant 0 : index
    %17 = vector.load %arg10[%c0_12, %c0_13] : memref<8x128xf32, #tpu.memory_space<vmem>>, vector<8x128xf32>
    tpu.vector_store %arg10[%c0_12, %c0_13], %16 {strides = array<i32>} : memref<8x128xf32, #tpu.memory_space<vmem>>, vector<8x128xf32>,
    %c0_i32_14 = arith.constant 0 : i32
    %18 = arith.cmpi eq, %arg1, %c0_i32_14 : i32
    %19 = arith.extui %18 : i1 to i32
    %c0_i32_15 = arith.constant 0 : i32
    %20 = arith.cmpi ne, %19, %c0_i32_15 : i32
    scf.if %20 {
      %c0_16 = arith.constant 0 : index
      %c0_17 = arith.constant 0 : index
      %21 = vector.load %arg2[%c0_16, %c0_17] : memref<8x128xf32, #tpu.memory_space<vmem>>, vector<8x128xf32>
      %c0_18 = arith.constant 0 : index
      %c0_19 = arith.constant 0 : index
      %22 = vector.load %arg10[%c0_18, %c0_19] : memref<8x128xf32, #tpu.memory_space<vmem>>, vector<8x128xf32>
      %23 = arith.addf %21, %22 : vector<8x128xf32>
      %c0_20 = arith.constant 0 : index
      %c0_21 = arith.constant 0 : index
      %24 = vector.load %arg6[%c0_20, %c0_21] : memref<1x128xf32, #tpu.memory_space<vmem>>, vector<1x128xf32>
      %25 = vector.broadcast %24 : vector<1x128xf32> to vector<8x128xf32>
      %26 = arith.addf %23, %25 : vector<8x128xf32>
      %cst_22 = arith.constant dense<0.000000e+00> : vector<8xf32>
      %27 = vector.multi_reduction <add>, %26, %cst_22 [1] : vector<8x128xf32> to vector<8xf32>
      %28 = vector.shape_cast %27 : vector<8xf32> to vector<8x1xf32>
      %cst_23 = arith.constant 1.280000e+02 : f32
      %29 = vector.broadcast %cst_23 : f32 to vector<8x1xf32>
      %30 = arith.divf %28, %29 : vector<8x1xf32>
      %31 = vector.broadcast %30 : vector<8x1xf32> to vector<8x128xf32>
      %32 = arith.subf %26, %31 : vector<8x128xf32>
      %33 = arith.mulf %32, %32 : vector<8x128xf32>
      %cst_24 = arith.constant dense<0.000000e+00> : vector<8xf32>
      %34 = vector.multi_reduction <add>, %33, %cst_24 [1] : vector<8x128xf32> to vector<8xf32>
      %35 = vector.shape_cast %34 : vector<8xf32> to vector<8x1xf32>
      %cst_25 = arith.constant 1.280000e+02 : f32
      %36 = vector.broadcast %cst_25 : f32 to vector<8x1xf32>
      %37 = arith.divf %35, %36 : vector<8x1xf32>
      %cst_26 = arith.constant 9.99999974E-6 : f32
      %38 = vector.broadcast %cst_26 : f32 to vector<8x1xf32>
      %39 = arith.addf %37, %38 : vector<8x1xf32>
      %40 = math.rsqrt %39 : vector<8x1xf32>
      %41 = vector.broadcast %40 : vector<8x1xf32> to vector<8x128xf32>
      %42 = arith.mulf %32, %41 : vector<8x128xf32>
      %c0_27 = arith.constant 0 : index
      %c0_28 = arith.constant 0 : index
      %43 = vector.load %arg7[%c0_27, %c0_28] : memref<1x128xf32, #tpu.memory_space<vmem>>, vector<1x128xf32>
      %44 = vector.broadcast %43 : vector<1x128xf32> to vector<8x128xf32>
      %45 = arith.mulf %42, %44 : vector<8x128xf32>
      %c0_29 = arith.constant 0 : index
      %c0_30 = arith.constant 0 : index
      %46 = vector.load %arg8[%c0_29, %c0_30] : memref<1x128xf32, #tpu.memory_space<vmem>>, vector<1x128xf32>
      %47 = vector.broadcast %46 : vector<1x128xf32> to vector<8x128xf32>
      %48 = arith.addf %45, %47 : vector<8x128xf32>
      %c0_31 = arith.constant 0 : index
      %c0_32 = arith.constant 0 : index
      %49 = vector.load %arg9[%c0_31, %c0_32] : memref<8x128xf32, #tpu.memory_space<vmem>>, vector<8x128xf32>
      tpu.vector_store %arg9[%c0_31, %c0_32], %48 {strides = array<i32>} : memref<8x128xf32, #tpu.memory_space<vmem>>, vector<8x128xf32>,
    } else {
    }
    return
  }
  func.func @transform_0(%arg0: i32, %arg1: i32) -> (i32, i32) {
    %c0_i32 = arith.constant 0 : i32
    %c0_i32_0 = arith.constant 0 : i32
    return %arg0, %c0_i32 : i32, i32
  }
  func.func @transform_1(%arg0: i32, %arg1: i32) -> (i32, i32) {
    %c0_i32 = arith.constant 0 : i32
    %c0_i32_0 = arith.constant 0 : i32
    return %c0_i32, %arg1 : i32, i32
  }
  func.func @transform_2(%arg0: i32, %arg1: i32) -> (i32, i32) {
    %c0_i32 = arith.constant 0 : i32
    %c0_i32_0 = arith.constant 0 : i32
    return %c0_i32, %arg1 : i32, i32
  }
  func.func @transform_3(%arg0: i32, %arg1: i32) -> (i32, i32) {
    %c0_i32 = arith.constant 0 : i32
    %c0_i32_0 = arith.constant 0 : i32
    return %arg1, %c0_i32 : i32, i32
  }
  func.func @transform_4(%arg0: i32, %arg1: i32) -> (i32, i32) {
    %c0_i32 = arith.constant 0 : i32
    %c0_i32_0 = arith.constant 0 : i32
    %c0_i32_1 = arith.constant 0 : i32
    return %c0_i32, %c0_i32_0 : i32, i32
  }
  func.func @transform_5(%arg0: i32, %arg1: i32) -> (i32, i32) {
    %c0_i32 = arith.constant 0 : i32
    %c0_i32_0 = arith.constant 0 : i32
    %c0_i32_1 = arith.constant 0 : i32
    return %c0_i32, %c0_i32_0 : i32, i32
  }
  func.func @transform_6(%arg0: i32, %arg1: i32) -> (i32, i32) {
    %c0_i32 = arith.constant 0 : i32
    %c0_i32_0 = arith.constant 0 : i32
    %c0_i32_1 = arith.constant 0 : i32
    return %c0_i32, %c0_i32_0 : i32, i32
  }
  func.func @transform_7(%arg0: i32, %arg1: i32) -> (i32, i32) {
    %c0_i32 = arith.constant 0 : i32
    %c0_i32_0 = arith.constant 0 : i32
    return %arg0, %c0_i32 : i32, i32
  }
}

</mosaic_0001>

<llo_original>
// kernel: feed_forward_net.1
$region0: #{feed_forward_net.1}
  #allocation0 [shape = 'u32[]', space=smem, size = 0x4, offset = 0x4, fixed_abs, tag = 'smem constant byte address 0x4 - core index']
  #allocation1 [shape = 'u32[144,128]{1,0:T(1,128)}', space=vmem, size = 0x12000, scoped, tag = 'internal scratch']
  #allocation2 [shape = 'f32[8,128]{1,0:T(8,128)}', space=vmem, size = 0x1000, scoped, tag = 'scratch operand']
  %s0 = inlined_call_operand.hbm [shape: f32[16,128], index: 0, kind: input, shape index: {}]
  %s1 = inlined_call_operand.hbm [shape: bf16[128,256], index: 1, kind: input, shape index: {}]
  %s2 = inlined_call_operand.vmem [shape: bf16[1,256], index: 2, kind: input, shape index: {}]
  %s3 = inlined_call_operand.hbm [shape: bf16[256,128], index: 3, kind: input, shape index: {}]
  %s4 = inlined_call_operand.vmem [shape: f32[1,128], index: 4, kind: input, shape index: {}]
  %s5 = inlined_call_operand.vmem [shape: f32[1,128], index: 5, kind: input, shape index: {}]
  %s6 = inlined_call_operand.vmem [shape: f32[1,128], index: 6, kind: input, shape index: {}]
  %s7 = inlined_call_operand.hbm [shape: f32[16,128], index: 7, kind: output, shape index: {}]
  %s8 = sld [smem:[#allocation0]]
  $region81: #{feed_forward_net.1} parent=0
    _
  %s10 = ssub.s32 1, %s8
  %s11 = scalar_select 0, %s10, %s8
  $region1: #{feed_forward_net.1} parent=0
    #allocation3 [shape = 'u8[8192]{0}', space=vmem, size = 0x2000, scoped, tag = 'input window, operand 0']
    #allocation4 [shape = 's32[2]{0}', space=sflag, size = 0x8, scoped, tag = 'scoped memory for feed_forward_net.1']
    #allocation5 [shape = 's32[2]{0}', space=sflag, size = 0x8, scoped, tag = 'scoped memory for feed_forward_net.1']
    #allocation6 [shape = 'u8[65536]{0}', space=vmem, size = 0x10000, scoped, tag = 'input window, operand 1, single buffered']
    #allocation7 [shape = 's32[1]{0}', space=sflag, size = 0x4, scoped, tag = 'scoped memory for feed_forward_net.1']
    #allocation8 [shape = 'u8[65536]{0}', space=vmem, size = 0x10000, scoped, tag = 'input window, operand 3, single buffered']
    #allocation9 [shape = 'u8[8192]{0}', space=vmem, size = 0x2000, scoped, tag = 'output window, operand 0']
    %12 = vsyncpa [#allocation4], 0
    %s13 = scalar_lea.sflag [#allocation4], 1
    %14 = vsyncpa %s13, 0
    %15 = vsyncpa [#allocation7], 0
    %16 = vsyncpa [#allocation5], 0
    %s17 = scalar_lea.sflag [#allocation5], 1
    %18 = vsyncpa %s17, 0
    loop: start=0, step=1, limit=4
    $region2: #{feed_forward_net.1} parent=1 // loop_pre_header
      _
    $region3: #{feed_forward_net.1} parent=1 // loop_header
      %s20 = sphi 0, %s24
      %p21 = scmp.ge.s32.totalorder %s20, 4
      %s27 = sphi 0, %s39
      %s28 = sphi 0, %s35
      %s29 = sphi 0, %s27
      %s30 = sphi 0, %s28
      %s31 = sphi 0, %s29
      %s32 = sphi 0, %s30
      %s42 = sphi 0, %s44
      %s45 = sphi 0, %s42
      %s46 = sphi 0, %s45
      %s62 = sphi 0, %s46
      %s68 = sphi 0, %s70
      %s71 = sphi 0, %s68
      %s72 = sphi 0, %s71
      %s88 = sphi 0, %s72
      %s94 = sphi 0, %s96
      %s97 = sphi 0, %s94
      %s98 = sphi 0, %s97
      %s114 = sphi 0, %s98
      %s120 = sphi 0, %s122
      %s123 = sphi 0, %s120
      %s124 = sphi 0, %s123
      %s140 = sphi 0, %s124
      %s144 = sphi 0, %s144
      %s146 = sphi 0, %s144
      %s147 = sphi 0, %s146
      %s161 = sphi 0, %s147
      %s165 = sphi 0, %s165
      %s167 = sphi 0, %s165
      %s168 = sphi 0, %s167
      %s182 = sphi 0, %s168
      %s186 = sphi 0, %s186
      %s188 = sphi 0, %s186
      %s189 = sphi 0, %s188
      %s203 = sphi 0, %s189
      %s209 = sphi 0, %s211
      %s212 = sphi 0, %s209
      %s213 = sphi 0, %s212
      %s229 = sphi 0, %s213
    $region4: #{feed_forward_net.1} parent=1 // loop_header_branch
      %23 = sbr.rel (%p21) target = $region8
    $region5: #{feed_forward_net.1} parent=1 // loop_body
      %s25 = ssub.s32 %s20, 1
      %s26 = ssub.s32 %s20, 2
      %s33 = sadd.s32 1, %s28
      %p34 = scmp.ge.s32.totalorder %s33, 1
      %s35 = scalar_select %p34, 0, %s33
      %s36 = sadd.s32 1, %s27
      %s37 = scalar_select %p34, %s36, %s27
      %p38 = scmp.ge.s32.totalorder %s37, 2
      %s39 = scalar_select %p38, 0, %s37
      %s40 = ssub.s32 %s27, %s39
      %p41 = scmp.eq.s32.totalorder %s40, 0
      %s43 = sadd.s32 %s42, 1
      %s44 = scalar_select %p41, %s42, %s43
      %p47 = pneg %p41
      %p48 = scmp.eq.s32.totalorder %s20, 1
      %p49 = por %p47, %p48
      %p50 = scmp.ne.s32.totalorder %s42, %s45
      %p51 = scmp.eq.s32.totalorder %s20, 0
      %p52 = por %p50, %p51
      %p53 = scmp.ne.s32.totalorder %s42, %s45
      %p54 = scmp.eq.s32.totalorder %s25, 1
      %p55 = por %p53, %p54
      %p56 = scmp.ne.s32.totalorder %s45, %s46
      %p57 = scmp.eq.s32.totalorder %s25, 0
      %p58 = por %p56, %p57
      %p59 = scmp.ne.s32.totalorder %s45, %s46
      %p60 = scmp.eq.s32.totalorder %s26, 1
      %p61 = por %p59, %p60
      %p63 = scmp.ne.s32.totalorder %s46, %s62
      %p64 = scmp.eq.s32.totalorder %s26, 0
      %p65 = por %p63, %p64
      %s66 = ssub.s32 %s28, %s35
      %p67 = scmp.eq.s32.totalorder %s66, 0
      %s69 = sadd.s32 %s68, 1
      %s70 = scalar_select %p67, %s68, %s69
      %p73 = pneg %p67
      %p74 = scmp.eq.s32.totalorder %s20, 1
      %p75 = por %p73, %p74
      %p76 = scmp.ne.s32.totalorder %s68, %s71
      %p77 = scmp.eq.s32.totalorder %s20, 0
      %p78 = por %p76, %p77
      %p79 = scmp.ne.s32.totalorder %s68, %s71
      %p80 = scmp.eq.s32.totalorder %s25, 1
      %p81 = por %p79, %p80
      %p82 = scmp.ne.s32.totalorder %s71, %s72
      %p83 = scmp.eq.s32.totalorder %s25, 0
      %p84 = por %p82, %p83
      %p85 = scmp.ne.s32.totalorder %s71, %s72
      %p86 = scmp.eq.s32.totalorder %s26, 1
      %p87 = por %p85, %p86
      %p89 = scmp.ne.s32.totalorder %s72, %s88
      %p90 = scmp.eq.s32.totalorder %s26, 0
      %p91 = por %p89, %p90
      %s92 = ssub.s32 %s28, %s35
      %p93 = scmp.eq.s32.totalorder %s92, 0
      %s95 = sadd.s32 %s94, 1
      %s96 = scalar_select %p93, %s94, %s95
      %p99 = pneg %p93
      %p100 = scmp.eq.s32.totalorder %s20, 1
      %p101 = por %p99, %p100
      %p102 = scmp.ne.s32.totalorder %s94, %s97
      %p103 = scmp.eq.s32.totalorder %s20, 0
      %p104 = por %p102, %p103
      %p105 = scmp.ne.s32.totalorder %s94, %s97
      %p106 = scmp.eq.s32.totalorder %s25, 1
      %p107 = por %p105, %p106
      %p108 = scmp.ne.s32.totalorder %s97, %s98
      %p109 = scmp.eq.s32.totalorder %s25, 0
      %p110 = por %p108, %p109
      %p111 = scmp.ne.s32.totalorder %s97, %s98
      %p112 = scmp.eq.s32.totalorder %s26, 1
      %p113 = por %p111, %p112
      %p115 = scmp.ne.s32.totalorder %s98, %s114
      %p116 = scmp.eq.s32.totalorder %s26, 0
      %p117 = por %p115, %p116
      %s118 = ssub.s32 %s28, %s35
      %p119 = scmp.eq.s32.totalorder %s118, 0
      %s121 = sadd.s32 %s120, 1
      %s122 = scalar_select %p119, %s120, %s121
      %p125 = pneg %p119
      %p126 = scmp.eq.s32.totalorder %s20, 1
      %p127 = por %p125, %p126
      %p128 = scmp.ne.s32.totalorder %s120, %s123
      %p129 = scmp.eq.s32.totalorder %s20, 0
      %p130 = por %p128, %p129
      %p131 = scmp.ne.s32.totalorder %s120, %s123
      %p132 = scmp.eq.s32.totalorder %s25, 1
      %p133 = por %p131, %p132
      %p134 = scmp.ne.s32.totalorder %s123, %s124
      %p135 = scmp.eq.s32.totalorder %s25, 0
      %p136 = por %p134, %p135
      %p137 = scmp.ne.s32.totalorder %s123, %s124
      %p138 = scmp.eq.s32.totalorder %s26, 1
      %p139 = por %p137, %p138
      %p141 = scmp.ne.s32.totalorder %s124, %s140
      %p142 = scmp.eq.s32.totalorder %s26, 0
      %p143 = por %p141, %p142
      %s145 = sadd.s32 %s144, 1
      %p148 = scmp.eq.s32.totalorder %s20, 1
      %p149 = scmp.ne.s32.totalorder %s144, %s146
      %p150 = scmp.eq.s32.totalorder %s20, 0
      %p151 = por %p149, %p150
      %p152 = scmp.ne.s32.totalorder %s144, %s146
      %p153 = scmp.eq.s32.totalorder %s25, 1
      %p154 = por %p152, %p153
      %p155 = scmp.ne.s32.totalorder %s146, %s147
      %p156 = scmp.eq.s32.totalorder %s25, 0
      %p157 = por %p155, %p156
      %p158 = scmp.ne.s32.totalorder %s146, %s147
      %p159 = scmp.eq.s32.totalorder %s26, 1
      %p160 = por %p158, %p159
      %p162 = scmp.ne.s32.totalorder %s147, %s161
      %p163 = scmp.eq.s32.totalorder %s26, 0
      %p164 = por %p162, %p163
      %s166 = sadd.s32 %s165, 1
      %p169 = scmp.eq.s32.totalorder %s20, 1
      %p170 = scmp.ne.s32.totalorder %s165, %s167
      %p171 = scmp.eq.s32.totalorder %s20, 0
      %p172 = por %p170, %p171
      %p173 = scmp.ne.s32.totalorder %s165, %s167
      %p174 = scmp.eq.s32.totalorder %s25, 1
      %p175 = por %p173, %p174
      %p176 = scmp.ne.s32.totalorder %s167, %s168
      %p177 = scmp.eq.s32.totalorder %s25, 0
      %p178 = por %p176, %p177
      %p179 = scmp.ne.s32.totalorder %s167, %s168
      %p180 = scmp.eq.s32.totalorder %s26, 1
      %p181 = por %p179, %p180
      %p183 = scmp.ne.s32.totalorder %s168, %s182
      %p184 = scmp.eq.s32.totalorder %s26, 0
      %p185 = por %p183, %p184
      %s187 = sadd.s32 %s186, 1
      %p190 = scmp.eq.s32.totalorder %s20, 1
      %p191 = scmp.ne.s32.totalorder %s186, %s188
      %p192 = scmp.eq.s32.totalorder %s20, 0
      %p193 = por %p191, %p192
      %p194 = scmp.ne.s32.totalorder %s186, %s188
      %p195 = scmp.eq.s32.totalorder %s25, 1
      %p196 = por %p194, %p195
      %p197 = scmp.ne.s32.totalorder %s188, %s189
      %p198 = scmp.eq.s32.totalorder %s25, 0
      %p199 = por %p197, %p198
      %p200 = scmp.ne.s32.totalorder %s188, %s189
      %p201 = scmp.eq.s32.totalorder %s26, 1
      %p202 = por %p200, %p201
      %p204 = scmp.ne.s32.totalorder %s189, %s203
      %p205 = scmp.eq.s32.totalorder %s26, 0
      %p206 = por %p204, %p205
      %s207 = ssub.s32 %s27, %s39
      %p208 = scmp.eq.s32.totalorder %s207, 0
      %s210 = sadd.s32 %s209, 1
      %s211 = scalar_select %p208, %s209, %s210
      %p214 = pneg %p208
      %p215 = scmp.eq.s32.totalorder %s20, 1
      %p216 = por %p214, %p215
      %p217 = scmp.ne.s32.totalorder %s209, %s212
      %p218 = scmp.eq.s32.totalorder %s20, 0
      %p219 = por %p217, %p218
      %p220 = scmp.ne.s32.totalorder %s209, %s212
      %p221 = scmp.eq.s32.totalorder %s25, 1
      %p222 = por %p220, %p221
      %p223 = scmp.ne.s32.totalorder %s212, %s213
      %p224 = scmp.eq.s32.totalorder %s25, 0
      %p225 = por %p223, %p224
      %p226 = scmp.ne.s32.totalorder %s212, %s213
      %p227 = scmp.eq.s32.totalorder %s26, 1
      %p228 = por %p226, %p227
      %p230 = scmp.ne.s32.totalorder %s213, %s229
      %p231 = scmp.eq.s32.totalorder %s26, 0
      %p232 = por %p230, %p231
      %p233 = scmp.le.s32.totalorder 1, %s20
      %p234 = scmp.lt.s32.totalorder %s20, 3
      %p235 = pnand %p233, %p234
      %p236 = pneg %p235
      // Predicated region
      $region9: #{feed_forward_net.1} parent=5 // pred_check
        _
      $region10: #{feed_forward_net.1} parent=5 // pred_check_branch
        %238 = sbr.rel (%p235) target = $region12
      $region11: #{feed_forward_net.1} parent=5 // pred_region
        %s239 = ssub.s32 %s20, 1
        // Predicated region
        $region13: #{feed_forward_net.1} parent=11 // pred_check
          %p240 = pneg %p84
        $region14: #{feed_forward_net.1} parent=11 // pred_check_branch
          %242 = sbr.rel (%p240) target = $region16
        $region15: #{feed_forward_net.1} parent=11 // pred_region
          %s243 = smul.u32 2, %s30
          %s245 = ssub.s32 2048, 2048
          %246 = vsyncadd [#allocation7], %s245
          %s247 = smul.addr %s243, 64
          %s248 = scalar_lea.hbm %s1, %s247
          %s249 = sshll.u32 [#allocation6], 4
          %s250 = int_to_ptr.vmem [resolvable:$true] %s249
          %255 = dma.hbm_to_vmem [thread:$0]  %s248, 2048, %s250, [#allocation7], 128, 128, 8
        $region16: #{feed_forward_net.1} parent=11 // pred_fallthru
          _
        // Predicated region
        $region17: #{feed_forward_net.1} parent=11 // pred_check
          %p256 = pneg %p110
        $region18: #{feed_forward_net.1} parent=11 // pred_check_branch
          %258 = sbr.rel (%p256) target = $region20
        $region19: #{feed_forward_net.1} parent=11 // pred_region
          %s259 = smul.u32 2, %s30
          %p260 = scmp.lt.s32.totalorder %s259, 1
          %s261 = scalar_select %p260, %s259, 1
          %s262 = scalar_lea.vmem %s2, %s261
          %s263 = smul.u32 2, %s30
        $region20: #{feed_forward_net.1} parent=11 // pred_fallthru
          _
        // Predicated region
        $region21: #{feed_forward_net.1} parent=11 // pred_check
          %p264 = pneg %p136
        $region22: #{feed_forward_net.1} parent=11 // pred_check_branch
          %266 = sbr.rel (%p264) target = $region24
        $region23: #{feed_forward_net.1} parent=11 // pred_region
          %s267 = smul.u32 32, %s30
          %s269 = ssub.s32 2048, 2048
          %270 = vsyncadd [#allocation7], %s269
          %s271 = smul.addr %s267, 64
          %s272 = scalar_lea.hbm %s3, %s271
          %s273 = sshll.u32 [#allocation8], 4
          %s274 = int_to_ptr.vmem [resolvable:$true] %s273
          %279 = dma.hbm_to_vmem [thread:$0]  %s272, 2048, %s274, [#allocation7], 64, 64, 4
        $region24: #{feed_forward_net.1} parent=11 // pred_fallthru
          _
        // Predicated region
        $region25: #{feed_forward_net.1} parent=11 // pred_check
          %p280 = pneg %p157
        $region26: #{feed_forward_net.1} parent=11 // pred_check_branch
          %282 = sbr.rel (%p280) target = $region28
        $region27: #{feed_forward_net.1} parent=11 // pred_region
          _
        $region28: #{feed_forward_net.1} parent=11 // pred_fallthru
          _
        // Predicated region
        $region29: #{feed_forward_net.1} parent=11 // pred_check
          %p283 = pneg %p178
        $region30: #{feed_forward_net.1} parent=11 // pred_check_branch
          %285 = sbr.rel (%p283) target = $region32
        $region31: #{feed_forward_net.1} parent=11 // pred_region
          _
        $region32: #{feed_forward_net.1} parent=11 // pred_fallthru
          _
        // Predicated region
        $region33: #{feed_forward_net.1} parent=11 // pred_check
          %p286 = pneg %p199
        $region34: #{feed_forward_net.1} parent=11 // pred_check_branch
          %288 = sbr.rel (%p286) target = $region36
        $region35: #{feed_forward_net.1} parent=11 // pred_region
          _
        $region36: #{feed_forward_net.1} parent=11 // pred_fallthru
          _
      $region12: #{feed_forward_net.1} parent=5 // pred_fallthru
        _
      %p289 = scmp.lt.s32.totalorder %s20, 2
      // Predicated region
      $region37: #{feed_forward_net.1} parent=5 // pred_check
        %p290 = pneg %p289
      $region38: #{feed_forward_net.1} parent=5 // pred_check_branch
        %292 = sbr.rel (%p290) target = $region40
      $region39: #{feed_forward_net.1} parent=5 // pred_region
        // Predicated region
        $region41: #{feed_forward_net.1} parent=39 // pred_check
          %p293 = pneg %p52
        $region42: #{feed_forward_net.1} parent=39 // pred_check_branch
          %295 = sbr.rel (%p293) target = $region44
        $region43: #{feed_forward_net.1} parent=39 // pred_region
          %s296 = sand.u32 %s42, 1
          %s297 = scalar_lea.sflag [#allocation4], %s296
          %s298 = sand.u32 %s42, 1
          %s299 = smul.addr %s298, 8
          %s300 = scalar_lea.vmem [#allocation3], %s299
          %s302 = ssub.s32 128, 128
          %303 = vsyncadd %s297, %s302
          %s304 = smul.addr %s27, 128
          %s305 = scalar_lea.hbm %s0, %s304
          %s307 = sshll.u32 %s300, 4
          %s308 = int_to_ptr.vmem [resolvable:$true] %s307
          %310 = dma.hbm_to_vmem [thread:$0]  %s305, 128, %s308, %s297
        $region44: #{feed_forward_net.1} parent=39 // pred_fallthru
          _
      $region40: #{feed_forward_net.1} parent=5 // pred_fallthru
        _
      %p311 = scmp.le.s32.totalorder 1, %s20
      %p312 = scmp.lt.s32.totalorder %s20, 3
      %p313 = pnand %p311, %p312
      %p314 = pneg %p313
      // Predicated region
      $region45: #{feed_forward_net.1} parent=5 // pred_check
        _
      $region46: #{feed_forward_net.1} parent=5 // pred_check_branch
        %316 = sbr.rel (%p313) target = $region48
      $region47: #{feed_forward_net.1} parent=5 // pred_region
        %s317 = ssub.s32 %s20, 1
        %s318 = sand.u32 %s45, 1
        %s319 = scalar_lea.sflag [#allocation4], %s318
        %s320 = sand.u32 %s45, 1
        %s321 = smul.addr %s320, 8
        %s322 = scalar_lea.vmem [#allocation3], %s321
        // Predicated region
        $region49: #{feed_forward_net.1} parent=47 // pred_check
          %p323 = pneg %p58
        $region50: #{feed_forward_net.1} parent=47 // pred_check_branch
          %325 = sbr.rel (%p323) target = $region52
        $region51: #{feed_forward_net.1} parent=47 // pred_region
          %326 = dma.done %s319, 128
        $region52: #{feed_forward_net.1} parent=47 // pred_fallthru
          _
        // Predicated region
        $region53: #{feed_forward_net.1} parent=47 // pred_check
          %p327 = pneg %p84
        $region54: #{feed_forward_net.1} parent=47 // pred_check_branch
          %329 = sbr.rel (%p327) target = $region56
        $region55: #{feed_forward_net.1} parent=47 // pred_region
          %330 = dma.done [#allocation7], 2048
        $region56: #{feed_forward_net.1} parent=47 // pred_fallthru
          _
        // Predicated region
        $region57: #{feed_forward_net.1} parent=47 // pred_check
          %p331 = pneg %p136
        $region58: #{feed_forward_net.1} parent=47 // pred_check_branch
          %333 = sbr.rel (%p331) target = $region60
        $region59: #{feed_forward_net.1} parent=47 // pred_region
          %334 = dma.done [#allocation7], 2048
        $region60: #{feed_forward_net.1} parent=47 // pred_fallthru
          _
        %s335 = sand.u32 %s45, 1
        %s336 = scalar_lea.sflag [#allocation4], %s335
        %s337 = sand.u32 %s45, 1
        %s338 = smul.addr %s337, 8
        %s339 = scalar_lea.vmem [#allocation3], %s338
        %p340 = pneg %p58
        %p341 = pneg %p55
        %p342 = pneg %p84
        %p343 = pneg %p81
        %s344 = smul.u32 2, %s30
        %p345 = scmp.lt.s32.totalorder %s344, 1
        %s346 = scalar_select %p345, %s344, 1
        %s347 = scalar_lea.vmem %s2, %s346
        %p348 = pneg %p110
        %p349 = pneg %p107
        %p350 = pneg %p136
        %p351 = pneg %p133
        %p352 = pneg %p157
        %p353 = pneg %p154
        %p354 = pneg %p178
        %p355 = pneg %p175
        %p356 = pneg %p199
        %p357 = pneg %p196
        %p358 = pneg %p225
        %p359 = pneg %p222
        %s360 = sand.u32 %s212, 1
        %s361 = scalar_lea.sflag [#allocation5], %s360
        %s362 = sand.u32 %s212, 1
        %s363 = smul.addr %s362, 8
        %s364 = scalar_lea.vmem [#allocation9], %s363
        %s365 = smul.u32 2, %s30
        %s366 = smul.u32 2, %s30
        %p367 = scmp.lt.s32.totalorder %s366, 1
        %s368 = scalar_select %p367, %s366, 1
        %s369 = scalar_lea.vmem %s2, %s368
        %s370 = smul.u32 2, %s30
        %s371 = smul.u32 32, %s30
        %p373 = scmp.eq.s32.totalorder %s30, 0
        // Predicated region
        $region61: #{feed_forward_net.1} parent=47 // pred_check
          %p374 = pneg %p373
        $region62: #{feed_forward_net.1} parent=47 // pred_check_branch
          %376 = sbr.rel (%p374) target = $region64
        $region63: #{feed_forward_net.1} parent=47 // pred_region
          %377 = vst [vmem:[#allocation2] sm:$0xff] 0.0
        $region64: #{feed_forward_net.1} parent=47 // pred_fallthru
          _
        %v378 = vld [vmem:[%s322] sm:$0xff]
        %v379 = vpack.c.bf16 %v378, %v378
        %v380 = vld [vmem:[#allocation6] sm:$0xff]
        %v381 = vld [vmem:[#allocation6 + $0x8] sm:$0xff]
        %v382 = vld [vmem:[#allocation6 + $0x10] sm:$0xff]
        %v383 = vld [vmem:[#allocation6 + $0x18] sm:$0xff]
        %v384 = vld [vmem:[#allocation6 + $0x20] sm:$0xff]
        %v385 = vld [vmem:[#allocation6 + $0x28] sm:$0xff]
        %v386 = vld [vmem:[#allocation6 + $0x30] sm:$0xff]
        %v387 = vld [vmem:[#allocation6 + $0x38] sm:$0xff]
        %v388 = vld [vmem:[#allocation6 + $0x40] sm:$0xff]
        %v389 = vld [vmem:[#allocation6 + $0x48] sm:$0xff]
        %v390 = vld [vmem:[#allocation6 + $0x50] sm:$0xff]
        %v391 = vld [vmem:[#allocation6 + $0x58] sm:$0xff]
        %v392 = vld [vmem:[#allocation6 + $0x60] sm:$0xff]
        %v393 = vld [vmem:[#allocation6 + $0x68] sm:$0xff]
        %v394 = vld [vmem:[#allocation6 + $0x70] sm:$0xff]
        %v395 = vld [vmem:[#allocation6 + $0x78] sm:$0xff]
        %v412 = vunpack.c.l.b16 %v380
        %v413 = vunpack.c.h.b16 %v380
        %v414 = vunpack.c.l.b16 %v381
        %v415 = vunpack.c.h.b16 %v381
        %v416 = vunpack.c.l.b16 %v382
        %v417 = vunpack.c.h.b16 %v382
        %v418 = vunpack.c.l.b16 %v383
        %v419 = vunpack.c.h.b16 %v383
        %v420 = vunpack.c.l.b16 %v384
        %v421 = vunpack.c.h.b16 %v384
        %v422 = vunpack.c.l.b16 %v385
        %v423 = vunpack.c.h.b16 %v385
        %v424 = vunpack.c.l.b16 %v386
        %v425 = vunpack.c.h.b16 %v386
        %v426 = vunpack.c.l.b16 %v387
        %v427 = vunpack.c.h.b16 %v387
        %v428 = vunpack.c.l.b16 %v388
        %v429 = vunpack.c.h.b16 %v388
        %v430 = vunpack.c.l.b16 %v389
        %v431 = vunpack.c.h.b16 %v389
        %v432 = vunpack.c.l.b16 %v390
        %v433 = vunpack.c.h.b16 %v390
        %v434 = vunpack.c.l.b16 %v391
        %v435 = vunpack.c.h.b16 %v391
        %v436 = vunpack.c.l.b16 %v392
        %v437 = vunpack.c.h.b16 %v392
        %v438 = vunpack.c.l.b16 %v393
        %v439 = vunpack.c.h.b16 %v393
        %v440 = vunpack.c.l.b16 %v394
        %v441 = vunpack.c.h.b16 %v394
        %v442 = vunpack.c.l.b16 %v395
        %v443 = vunpack.c.h.b16 %v395
        %v444 = vpack.c.b16 %v414, %v412
        %v445 = vpack.c.b16 %v415, %v413
        %v446 = vpack.c.b16 %v418, %v416
        %v447 = vpack.c.b16 %v419, %v417
        %v448 = vpack.c.b16 %v422, %v420
        %v449 = vpack.c.b16 %v423, %v421
        %v450 = vpack.c.b16 %v426, %v424
        %v451 = vpack.c.b16 %v427, %v425
        %v452 = vpack.c.b16 %v430, %v428
        %v453 = vpack.c.b16 %v431, %v429
        %v454 = vpack.c.b16 %v434, %v432
        %v455 = vpack.c.b16 %v435, %v433
        %v456 = vpack.c.b16 %v438, %v436
        %v457 = vpack.c.b16 %v439, %v437
        %v458 = vpack.c.b16 %v442, %v440
        %v459 = vpack.c.b16 %v443, %v441
        %476 = vmatprep.subr.bf16.mxu0 %v459
        %477 = vmatpush1.bf16.msra.mxu0 %v458
        %478 = vmatprep.subr.bf16.mxu0 %v457
        %479 = vmatpush1.bf16.msra.mxu0 %v456
        %480 = vmatprep.subr.bf16.mxu0 %v455
        %481 = vmatpush1.bf16.msra.mxu0 %v454
        %482 = vmatprep.subr.bf16.mxu0 %v453
        %483 = vmatpush1.bf16.msra.mxu0 %v452
        %484 = vmatprep.subr.bf16.mxu0 %v451
        %485 = vmatpush1.bf16.msra.mxu0 %v450
        %486 = vmatprep.subr.bf16.mxu0 %v449
        %487 = vmatpush1.bf16.msra.mxu0 %v448
        %488 = vmatprep.subr.bf16.mxu0 %v447
        %489 = vmatpush1.bf16.msra.mxu0 %v446
        %490 = vmatprep.subr.bf16.mxu0 %v445
        %491 = vmatpush1.bf16.msra.mxu0 %v444
        %492 = vmatprep.subr.bf16.mxu0 0
        %493 = vmatpush2.bf16.msra.mxu0 0
        %494 = vmatprep.subr.bf16.mxu0 0
        %495 = vmatpush2.bf16.msra.mxu0 0
        %496 = vmatprep.subr.bf16.mxu0 0
        %497 = vmatpush2.bf16.msra.mxu0 0
        %498 = vmatprep.subr.bf16.mxu0 0
        %499 = vmatpush2.bf16.msra.mxu0 0
        %500 = vmatprep.subr.bf16.mxu0 0
        %501 = vmatpush2.bf16.msra.mxu0 0
        %502 = vmatprep.subr.bf16.mxu0 0
        %503 = vmatpush2.bf16.msra.mxu0 0
        %504 = vmatprep.subr.bf16.mxu0 0
        %505 = vmatpush2.bf16.msra.mxu0 0
        %506 = vmatprep.subr.bf16.mxu0 0
        %507 = vmatpush2.bf16.msra.mxu0 0
        %508 = vmatprep.mubr.bf16.mxu0 0
        %509 = vmatmul.mubr.bf16.gmra.mxu0 %v379
        %v510 = vpop.f32.mrf.mxu0
        %v511 = vadd.f32 0.0, %v510
        %v512 = vpop.f32.mrf.mxu0
        %v513 = vadd.f32 0.0, %v512
        %v514 = vpop.f32.mrf.mxu0
        %v515 = vpop.f32.mrf.mxu0
        %516 = vdwg.mxu0
        %v517 = vpack.c.bf16 %v511, %v511
        %v518 = vpack.c.bf16 %v513, %v513
        %v519 = vld [vmem:[%s369] sm:$0x3]
        %v522 = vunpack.c.l.s4 1966171168
        %v523 = vunpack.c.0.s8 %v522
        %v524 = vlaneseq
        %v525 = vshrl.u32 %v524, 7
        %v526 = vsub.s32 %v523, %v525
        %v527 = vrot.slane %v519, %v526
        %v528 = vcombine.high %v527, %v527
        %v530 = vunpack.c.l.s4 1966171168
        %v531 = vunpack.c.0.s8 %v530
        %v532 = vlaneseq
        %v533 = vshrl.u32 %v532, 7
        %v534 = vsub.s32 %v531, %v533
        %v535 = vrot.slane %v527, %v534
        %v537 = vunpack.c.l.s4 1966171168
        %v538 = vunpack.c.0.s8 %v537
        %v539 = vlaneseq
        %v540 = vshrl.u32 %v539, 7
        %v541 = vsub.s32 %v538, %v540
        %v542 = vrot.slane %v528, %v541
        %v544 = vpack.i.b16 %v535, %v535
        %v546 = vlaneseq
        %v547 = vshrl.u32 %v546, 7
        %v548 = vsub.s32 0, %v547
        %v549 = vrot.slane %v544, %v548
        %v551 = vpack.i.b16 %v542, %v542
        %v553 = vlaneseq
        %v554 = vshrl.u32 %v553, 7
        %v555 = vsub.s32 0, %v554
        %v556 = vrot.slane %v551, %v555
        %v557 = vadd.bf16 %v517, %v549
        %v558 = vadd.bf16 %v518, %v556
        %v559 = vmax.bf16 %v557, 0
        %v560 = vmax.bf16 %v558, 0
        %v561 = vld [vmem:[#allocation2] sm:$0xff]
        %v562 = vld [vmem:[#allocation8] sm:$0xf]
        %v563 = vld [vmem:[#allocation8 + $0x4] sm:$0xf]
        %v564 = vld [vmem:[#allocation8 + $0x8] sm:$0xf]
        %v565 = vld [vmem:[#allocation8 + $0xc] sm:$0xf]
        %v566 = vld [vmem:[#allocation8 + $0x10] sm:$0xf]
        %v567 = vld [vmem:[#allocation8 + $0x14] sm:$0xf]
        %v568 = vld [vmem:[#allocation8 + $0x18] sm:$0xf]
        %v569 = vld [vmem:[#allocation8 + $0x1c] sm:$0xf]
        %v570 = vld [vmem:[#allocation8 + $0x20] sm:$0xf]
        %v571 = vld [vmem:[#allocation8 + $0x24] sm:$0xf]
        %v572 = vld [vmem:[#allocation8 + $0x28] sm:$0xf]
        %v573 = vld [vmem:[#allocation8 + $0x2c] sm:$0xf]
        %v574 = vld [vmem:[#allocation8 + $0x30] sm:$0xf]
        %v575 = vld [vmem:[#allocation8 + $0x34] sm:$0xf]
        %v576 = vld [vmem:[#allocation8 + $0x38] sm:$0xf]
        %v577 = vld [vmem:[#allocation8 + $0x3c] sm:$0xf]
        %v578 = vld [vmem:[#allocation8 + $0x40] sm:$0xf]
        %v579 = vld [vmem:[#allocation8 + $0x44] sm:$0xf]
        %v580 = vld [vmem:[#allocation8 + $0x48] sm:$0xf]
        %v581 = vld [vmem:[#allocation8 + $0x4c] sm:$0xf]
        %v582 = vld [vmem:[#allocation8 + $0x50] sm:$0xf]
        %v583 = vld [vmem:[#allocation8 + $0x54] sm:$0xf]
        %v584 = vld [vmem:[#allocation8 + $0x58] sm:$0xf]
        %v585 = vld [vmem:[#allocation8 + $0x5c] sm:$0xf]
        %v586 = vld [vmem:[#allocation8 + $0x60] sm:$0xf]
        %v587 = vld [vmem:[#allocation8 + $0x64] sm:$0xf]
        %v588 = vld [vmem:[#allocation8 + $0x68] sm:$0xf]
        %v589 = vld [vmem:[#allocation8 + $0x6c] sm:$0xf]
        %v590 = vld [vmem:[#allocation8 + $0x70] sm:$0xf]
        %v591 = vld [vmem:[#allocation8 + $0x74] sm:$0xf]
        %v592 = vld [vmem:[#allocation8 + $0x78] sm:$0xf]
        %v593 = vld [vmem:[#allocation8 + $0x7c] sm:$0xf]
        %v626 = vunpack.c.l.b16 %v562
        %v627 = vunpack.c.l.b16 %v563
        %v628 = vunpack.c.l.b16 %v564
        %v629 = vunpack.c.l.b16 %v565
        %v630 = vunpack.c.l.b16 %v566
        %v631 = vunpack.c.l.b16 %v567
        %v632 = vunpack.c.l.b16 %v568
        %v633 = vunpack.c.l.b16 %v569
        %v634 = vunpack.c.l.b16 %v570
        %v635 = vunpack.c.l.b16 %v571
        %v636 = vunpack.c.l.b16 %v572
        %v637 = vunpack.c.l.b16 %v573
        %v638 = vunpack.c.l.b16 %v574
        %v639 = vunpack.c.l.b16 %v575
        %v640 = vunpack.c.l.b16 %v576
        %v641 = vunpack.c.l.b16 %v577
        %v642 = vunpack.c.l.b16 %v578
        %v643 = vunpack.c.l.b16 %v579
        %v644 = vunpack.c.l.b16 %v580
        %v645 = vunpack.c.l.b16 %v581
        %v646 = vunpack.c.l.b16 %v582
        %v647 = vunpack.c.l.b16 %v583
        %v648 = vunpack.c.l.b16 %v584
        %v649 = vunpack.c.l.b16 %v585
        %v650 = vunpack.c.l.b16 %v586
        %v651 = vunpack.c.l.b16 %v587
        %v652 = vunpack.c.l.b16 %v588
        %v653 = vunpack.c.l.b16 %v589
        %v654 = vunpack.c.l.b16 %v590
        %v655 = vunpack.c.l.b16 %v591
        %v656 = vunpack.c.l.b16 %v592
        %v657 = vunpack.c.l.b16 %v593
        %v658 = vpack.c.b16 %v627, %v626
        %v659 = vpack.c.b16 %v629, %v628
        %v660 = vpack.c.b16 %v631, %v630
        %v661 = vpack.c.b16 %v633, %v632
        %v662 = vpack.c.b16 %v635, %v634
        %v663 = vpack.c.b16 %v637, %v636
        %v664 = vpack.c.b16 %v639, %v638
        %v665 = vpack.c.b16 %v641, %v640
        %v666 = vpack.c.b16 %v643, %v642
        %v667 = vpack.c.b16 %v645, %v644
        %v668 = vpack.c.b16 %v647, %v646
        %v669 = vpack.c.b16 %v649, %v648
        %v670 = vpack.c.b16 %v651, %v650
        %v671 = vpack.c.b16 %v653, %v652
        %v672 = vpack.c.b16 %v655, %v654
        %v673 = vpack.c.b16 %v657, %v656
        %690 = vmatprep.subr.bf16.mxu0 0
        %691 = vmatpush1.bf16.msra.mxu0 %v665
        %692 = vmatprep.subr.bf16.mxu0 0
        %693 = vmatpush1.bf16.msra.mxu0 %v664
        %694 = vmatprep.subr.bf16.mxu0 0
        %695 = vmatpush1.bf16.msra.mxu0 %v663
        %696 = vmatprep.subr.bf16.mxu0 0
        %697 = vmatpush1.bf16.msra.mxu0 %v662
        %698 = vmatprep.subr.bf16.mxu0 0
        %699 = vmatpush1.bf16.msra.mxu0 %v661
        %700 = vmatprep.subr.bf16.mxu0 0
        %701 = vmatpush1.bf16.msra.mxu0 %v660
        %702 = vmatprep.subr.bf16.mxu0 0
        %703 = vmatpush1.bf16.msra.mxu0 %v659
        %704 = vmatprep.subr.bf16.mxu0 0
        %705 = vmatpush1.bf16.msra.mxu0 %v658
        %706 = vmatprep.subr.bf16.mxu0 0
        %707 = vmatpush2.bf16.msra.mxu0 %v673
        %708 = vmatprep.subr.bf16.mxu0 0
        %709 = vmatpush2.bf16.msra.mxu0 %v672
        %710 = vmatprep.subr.bf16.mxu0 0
        %711 = vmatpush2.bf16.msra.mxu0 %v671
        %712 = vmatprep.subr.bf16.mxu0 0
        %713 = vmatpush2.bf16.msra.mxu0 %v670
        %714 = vmatprep.subr.bf16.mxu0 0
        %715 = vmatpush2.bf16.msra.mxu0 %v669
        %716 = vmatprep.subr.bf16.mxu0 0
        %717 = vmatpush2.bf16.msra.mxu0 %v668
        %718 = vmatprep.subr.bf16.mxu0 0
        %719 = vmatpush2.bf16.msra.mxu0 %v667
        %720 = vmatprep.subr.bf16.mxu0 0
        %721 = vmatpush2.bf16.msra.mxu0 %v666
        %722 = vmatprep.mubr.bf16.mxu0 %v560
        %723 = vmatmul.mubr.bf16.gmra.mxu0 %v559
        %v724 = vpop.f32.mrf.mxu0
        %v725 = vadd.f32 0.0, %v724
        %v726 = vpop.f32.mrf.mxu0
        %v727 = vpop.f32.mrf.mxu0
        %v728 = vpop.f32.mrf.mxu0
        %729 = vdwg.mxu0
        %v730 = vadd.f32 %v561, %v725
        %731 = vst [vmem:[#allocation2] sm:$0xff] %v730
        // Predicated region
        $region65: #{feed_forward_net.1} parent=47 // pred_check
          %p732 = pneg %p373
        $region66: #{feed_forward_net.1} parent=47 // pred_check_branch
          %734 = sbr.rel (%p732) target = $region68
        $region67: #{feed_forward_net.1} parent=47 // pred_region
          %v735 = vld [vmem:[%s322] sm:$0xff]
          %v736 = vld [vmem:[#allocation2] sm:$0xff]
          %v737 = vadd.f32 %v735, %v736
          %v738 = vld [vmem:[%s4] sm:$0x1]
          %v740 = vlaneseq
          %v741 = vshrl.u32 %v740, 7
          %v742 = vsub.s32 0, %v741
          %v743 = vrot.slane %v738, %v742
          %v745 = vadd.f32 %v737, %v743
          %746 = vadd.xlane.f32.xlu0 %v745
          %v747 = vpop.xlane.xlu0 %746
          %v748 = vrcp.pop 128.0
          %v749 = vmul.f32 %v747, %v748
          %v750 = vsub.f32 %v745, %v749
          %v751 = vmul.f32 %v750, %v750
          %752 = vadd.xlane.f32.xlu0 %v751
          %v753 = vpop.xlane.xlu0 %752
          %v754 = vmul.f32 %v753, %v748
          %v755 = vadd.f32 %v754, 1e-05
          %v756 = vrsqrt.pop %v755
          %v757 = vmul.f32 %v750, %v756
          %v758 = vld [vmem:[%s5] sm:$0x1]
          %v760 = vlaneseq
          %v761 = vshrl.u32 %v760, 7
          %v762 = vsub.s32 0, %v761
          %v763 = vrot.slane %v758, %v762
          %v765 = vmul.f32 %v757, %v763
          %v766 = vld [vmem:[%s6] sm:$0x1]
          %v768 = vlaneseq
          %v769 = vshrl.u32 %v768, 7
          %v770 = vsub.s32 0, %v769
          %v771 = vrot.slane %v766, %v770
          %v773 = vadd.f32 %v765, %v771
          %774 = vst [vmem:[%s364] sm:$0xff] %v773
        $region68: #{feed_forward_net.1} parent=47 // pred_fallthru
          _
        %s775 = sand.u32 %s212, 1
        %s776 = scalar_lea.sflag [#allocation5], %s775
        %s777 = sand.u32 %s212, 1
        %s778 = smul.addr %s777, 8
        %s779 = scalar_lea.vmem [#allocation9], %s778
        // Predicated region
        $region69: #{feed_forward_net.1} parent=47 // pred_check
          %p780 = pneg %p222
        $region70: #{feed_forward_net.1} parent=47 // pred_check_branch
          %782 = sbr.rel (%p780) target = $region72
        $region71: #{feed_forward_net.1} parent=47 // pred_region
          %s784 = ssub.s32 128, 128
          %785 = vsyncadd %s776, %s784
          %s786 = smul.addr %s29, 128
          %s787 = scalar_lea.hbm %s7, %s786
          %s789 = sshll.u32 %s779, 4
          %s790 = int_to_ptr.vmem [resolvable:$true] %s789
          %792 = dma.vmem_to_hbm [thread:$0]  %s790, 128, %s787, %s776
        $region72: #{feed_forward_net.1} parent=47 // pred_fallthru
          _
      $region48: #{feed_forward_net.1} parent=5 // pred_fallthru
        _
      %p793 = scmp.le.s32.totalorder 2, %s20
      // Predicated region
      $region73: #{feed_forward_net.1} parent=5 // pred_check
        %p794 = pneg %p793
      $region74: #{feed_forward_net.1} parent=5 // pred_check_branch
        %796 = sbr.rel (%p794) target = $region76
      $region75: #{feed_forward_net.1} parent=5 // pred_region
        %s797 = ssub.s32 %s20, 2
        // Predicated region
        $region77: #{feed_forward_net.1} parent=75 // pred_check
          %p798 = pneg %p228
        $region78: #{feed_forward_net.1} parent=75 // pred_check_branch
          %800 = sbr.rel (%p798) target = $region80
        $region79: #{feed_forward_net.1} parent=75 // pred_region
          %s801 = sand.u32 %s213, 1
          %s802 = scalar_lea.sflag [#allocation5], %s801
          %s803 = sand.u32 %s213, 1
          %s804 = smul.addr %s803, 8
          %s805 = scalar_lea.vmem [#allocation9], %s804
          %806 = dma.done %s802, 128
        $region80: #{feed_forward_net.1} parent=75 // pred_fallthru
          _
      $region76: #{feed_forward_net.1} parent=5 // pred_fallthru
        _
    $region6: #{feed_forward_net.1} parent=1 // loop_footer
      %s24 = sadd.s32 1, %s20
    $region7: #{feed_forward_net.1} parent=1 // loop_footer_branch
      %19 = sbr.rel target = $region3
    $region8: #{feed_forward_net.1} parent=1 // loop_exit
      _
    %807 = vsyncpa [#allocation4], 1
    %s808 = scalar_lea.sflag [#allocation4], 1
    %809 = vsyncpa %s808, 1
    %810 = vsyncpa [#allocation7], 1
    %811 = vsyncpa [#allocation5], 1
    %s812 = scalar_lea.sflag [#allocation5], 1
    %813 = vsyncpa %s812, 1

</llo_original>
